<compile_context>
chip_gen: v7x
topology: tpu7x:2x2x1
jax: 0.10.0
libtpu: 0.0.40
codegen_flags: <defaults>
</compile_context>

<pallas_src>
import functools

import jax
import jax.numpy as jnp
from jax.experimental import pallas as pl
from jax.experimental.pallas import tpu as pltpu

LANE = 128
SUBLANE = 8
MAX_BLOCK_ROWS = 2048  # (2048, 128) f32 = 1 MiB per tile per input


def _berhu_kernel(pred_ref, targ_ref, out_ref, acc_ref, *,
                  threshold, inv_2t, n_valid, block_rows):
    i = pl.program_id(0)

    @pl.when(i == 0)
    def _init():
        acc_ref[...] = jnp.zeros_like(acc_ref)

    p = pred_ref[...].astype(jnp.float32)
    t = targ_ref[...].astype(jnp.float32)
    diff = jnp.abs(p - t)

    thr = jnp.float32(threshold)
    # where(diff <= t, diff, (diff^2 + t^2) / (2t))  ==  mask*l1 + (1-mask)*l2
    loss = jnp.where(diff <= thr, diff,
                     (diff * diff + thr * thr) * jnp.float32(inv_2t))

    # Mask out padded / out-of-range elements using the global flat index so
    # garbage in partially-overrunning edge blocks contributes exactly zero.
    row_ids = jax.lax.broadcasted_iota(jnp.int32, loss.shape, 0)
    lane_ids = jax.lax.broadcasted_iota(jnp.int32, loss.shape, 1)
    flat_idx = (i * block_rows + row_ids) * LANE + lane_ids
    loss = jnp.where(flat_idx < n_valid, loss, jnp.float32(0.0))

    # Vector-shaped accumulation: pure VPU elementwise add per step.
    acc_ref[...] += loss

    @pl.when(i == pl.num_programs(0) - 1)
    def _finalize():
        total = jnp.sum(acc_ref[...])  # single cross-lane reduce at the end
        out_ref[...] = (total / jnp.float32(n_valid)).reshape(1, 1)


def berhu_loss(pred, target, threshold=0.2):
    """BerHu loss, matching the PyTorch reference (returns a scalar f32)."""
    assert pred.shape == target.shape
    n_valid = pred.size

    flat_p = pred.reshape(-1)    # native dtype, no wrapper cast
    flat_t = target.reshape(-1)

    tile_elems = SUBLANE * LANE  # 1024
    pad = (-n_valid) % tile_elems
    if pad:
        # Rare ragged case: single small pad; masked in-kernel anyway.
        flat_p = jnp.pad(flat_p, (0, pad))
        flat_t = jnp.pad(flat_t, (0, pad))

    rows = (n_valid + pad) // LANE          # multiple of 8
    p2 = flat_p.reshape(rows, LANE)         # free bitcast reshape
    t2 = flat_t.reshape(rows, LANE)

    block_rows = min(MAX_BLOCK_ROWS, rows)  # multiple of 8 or == full dim
    grid = (pl.cdiv(rows, block_rows),)

    kernel = functools.partial(
        _berhu_kernel,
        threshold=float(threshold),
        inv_2t=1.0 / (2.0 * float(threshold)),
        n_valid=int(n_valid),
        block_rows=int(block_rows),
    )

    out = pl.pallas_call(
        kernel,
        out_shape=jax.ShapeDtypeStruct((1, 1), jnp.float32),
        grid_spec=pltpu.PrefetchScalarGridSpec(
            num_scalar_prefetch=0,
            grid=grid,
            in_specs=[
                pl.BlockSpec((block_rows, LANE), lambda i: (i, 0)),
                pl.BlockSpec((block_rows, LANE), lambda i: (i, 0)),
            ],
            out_specs=pl.BlockSpec((1, 1), lambda i: (0, 0)),
            scratch_shapes=[pltpu.VMEM((block_rows, LANE), jnp.float32)],
        ),
        compiler_params=pltpu.CompilerParams(
            dimension_semantics=("arbitrary",)),
    )(p2, t2)
    return out[0, 0]


def berhu_loss_ref(pred, target, threshold=0.2):
    diff = jnp.abs(pred.astype(jnp.float32) - target.astype(jnp.float32))
    mask = (diff <= threshold).astype(jnp.float32)
    l1_part = mask * diff
    l2_part = (1.0 - mask) * (diff * diff + threshold * threshold) / (2.0 * threshold)
    return jnp.mean(l1_part + l2_part)


if __name__ == "__main__":
    key = jax.random.PRNGKey(0)
    k1, k2 = jax.random.split(key)

    # Main case (NCHW, exactly divisible -> zero host-side copies).
    shape = (2, 4, 16, 16)
    pred = jax.random.normal(k1, shape, dtype=jnp.float32) * 0.3
    target = jax.random.normal(k2, shape, dtype=jnp.float32) * 0.3
    out = jax.block_until_ready(berhu_loss(pred, target, threshold=0.2))
    ref = berhu_loss_ref(pred, target, threshold=0.2)
    assert jnp.allclose(out, ref, rtol=1e-4, atol=1e-6), (out, ref)

    # Multi-step grid + partial last block (exercises accumulator + mask).
    shape2 = (2, 5, 256, 256)
    p2 = jax.random.normal(k1, shape2, dtype=jnp.float32) * 0.3
    t2 = jax.random.normal(k2, shape2, dtype=jnp.float32) * 0.3
    out2 = jax.block_until_ready(berhu_loss(p2, t2, threshold=0.2))
    ref2 = berhu_loss_ref(p2, t2, threshold=0.2)
    assert jnp.allclose(out2, ref2, rtol=1e-4, atol=1e-6), (out2, ref2)

    # Ragged element count (exercises the pad + global-index mask path).
    shape3 = (3, 5, 7, 11)
    p3 = jax.random.normal(k1, shape3, dtype=jnp.float32) * 0.3
    t3 = jax.random.normal(k2, shape3, dtype=jnp.float32) * 0.3
    out3 = jax.block_until_ready(berhu_loss(p3, t3, threshold=0.2))
    ref3 = berhu_loss_ref(p3, t3, threshold=0.2)
    assert jnp.allclose(out3, ref3, rtol=1e-4, atol=1e-6), (out3, ref3)

    print("KERNEL_OK")
</pallas_src>

<mosaic_0001>
module attributes {stable_mosaic.version = 11 : i64} {
  func.func @_berhu_kernel(%arg0: i32, %arg1: memref<16x128xf32, #tpu.memory_space<vmem>>, %arg2: memref<16x128xf32, #tpu.memory_space<vmem>>, %arg3: memref<1x1xf32, #tpu.memory_space<vmem>>, %arg4: memref<16x128xf32, #tpu.memory_space<vmem>>) attributes {dimension_semantics = [#tpu.dimension_semantics<arbitrary>], iteration_bounds = array<i64: 1>, scalar_prefetch = 0 : i64, scratch_operands = 1 : i64, tpu.core_type = #tpu.core_type<tc>, window_params = [{transform_indices = @transform_0, window_bounds = array<i64: 16, 128>}, {transform_indices = @transform_1, window_bounds = array<i64: 16, 128>}, {pipeline_mode = #tpu.pipeline_mode<synchronous>, transform_indices = @transform_2, window_bounds = array<i64: 1, 1>}]} {
    %c0_i32 = arith.constant 0 : i32
    %0 = arith.cmpi eq, %arg0, %c0_i32 : i32
    %1 = arith.extui %0 : i1 to i32
    %c0_i32_0 = arith.constant 0 : i32
    %2 = arith.cmpi ne, %1, %c0_i32_0 : i32
    scf.if %2 {
      %cst_14 = arith.constant 0.000000e+00 : f32
      %34 = vector.broadcast %cst_14 : f32 to vector<16x128xf32>
      %c0_15 = arith.constant 0 : index
      %c0_16 = arith.constant 0 : index
      %35 = vector.load %arg4[%c0_15, %c0_16] : memref<16x128xf32, #tpu.memory_space<vmem>>, vector<16x128xf32>
      tpu.vector_store %arg4[%c0_15, %c0_16], %34 {strides = array<i32>} : memref<16x128xf32, #tpu.memory_space<vmem>>, vector<16x128xf32>,
    } else {
    }
    %c0 = arith.constant 0 : index
    %c0_1 = arith.constant 0 : index
    %3 = vector.load %arg1[%c0, %c0_1] : memref<16x128xf32, #tpu.memory_space<vmem>>, vector<16x128xf32>
    %c0_2 = arith.constant 0 : index
    %c0_3 = arith.constant 0 : index
    %4 = vector.load %arg2[%c0_2, %c0_3] : memref<16x128xf32, #tpu.memory_space<vmem>>, vector<16x128xf32>
    %5 = arith.subf %3, %4 : vector<16x128xf32>
    %6 = math.absf %5 : vector<16x128xf32>
    %cst = arith.constant 2.000000e-01 : f32
    %7 = vector.broadcast %cst : f32 to vector<16x128xf32>
    %8 = arith.cmpf ole, %6, %7 : vector<16x128xf32>
    %9 = arith.mulf %6, %6 : vector<16x128xf32>
    %cst_4 = arith.constant 2.000000e-01 : f32
    %cst_5 = arith.constant 2.000000e-01 : f32
    %10 = arith.mulf %cst_4, %cst_5 : f32
    %11 = vector.broadcast %10 : f32 to vector<16x128xf32>
    %12 = arith.addf %9, %11 : vector<16x128xf32>
    %cst_6 = arith.constant 2.500000e+00 : f32
    %13 = vector.broadcast %cst_6 : f32 to vector<16x128xf32>
    %14 = arith.mulf %12, %13 : vector<16x128xf32>
    %15 = arith.select %8, %6, %14 : vector<16x128xi1>, vector<16x128xf32>
    %16 = tpu.iota {dimensions = array<i32: 0>} : vector<16x128xi32>
    %17 = tpu.iota {dimensions = array<i32: 1>} : vector<16x128xi32>
    %c16_i32 = arith.constant 16 : i32
    %18 = arith.muli %arg0, %c16_i32 : i32
    %19 = vector.broadcast %18 : i32 to vector<16x128xi32>
    %20 = arith.addi %19, %16 : vector<16x128xi32>
    %c128_i32 = arith.constant 128 : i32
    %21 = vector.broadcast %c128_i32 : i32 to vector<16x128xi32>
    %22 = arith.muli %20, %21 : vector<16x128xi32>
    %23 = arith.addi %22, %17 : vector<16x128xi32>
    %c2048_i32 = arith.constant 2048 : i32
    %24 = vector.broadcast %c2048_i32 : i32 to vector<16x128xi32>
    %25 = arith.cmpi slt, %23, %24 : vector<16x128xi32>
    %cst_7 = arith.constant 0.000000e+00 : f32
    %26 = vector.broadcast %cst_7 : f32 to vector<16x128xf32>
    %27 = arith.select %25, %15, %26 : vector<16x128xi1>, vector<16x128xf32>
    %c0_8 = arith.constant 0 : index
    %c0_9 = arith.constant 0 : index
    %28 = vector.load %arg4[%c0_8, %c0_9] : memref<16x128xf32, #tpu.memory_space<vmem>>, vector<16x128xf32>
    %29 = arith.addf %28, %27 : vector<16x128xf32>
    %c0_10 = arith.constant 0 : index
    %c0_11 = arith.constant 0 : index
    %30 = vector.load %arg4[%c0_10, %c0_11] : memref<16x128xf32, #tpu.memory_space<vmem>>, vector<16x128xf32>
    tpu.vector_store %arg4[%c0_10, %c0_11], %29 {strides = array<i32>} : memref<16x128xf32, #tpu.memory_space<vmem>>, vector<16x128xf32>,
    %c0_i32_12 = arith.constant 0 : i32
    %31 = arith.cmpi eq, %arg0, %c0_i32_12 : i32
    %32 = arith.extui %31 : i1 to i32
    %c0_i32_13 = arith.constant 0 : i32
    %33 = arith.cmpi ne, %32, %c0_i32_13 : i32
    scf.if %33 {
      %c0_14 = arith.constant 0 : index
      %c0_15 = arith.constant 0 : index
      %34 = vector.load %arg4[%c0_14, %c0_15] : memref<16x128xf32, #tpu.memory_space<vmem>>, vector<16x128xf32>
      %35 = vector.shape_cast %34 : vector<16x128xf32> to vector<1x16x128xf32>
      %cst_16 = arith.constant dense<0.000000e+00> : vector<1xf32>
      %36 = vector.multi_reduction <add>, %35, %cst_16 [1, 2] : vector<1x16x128xf32> to vector<1xf32>
      %37 = vector.shape_cast %36 : vector<1xf32> to vector<1x1x1xf32>
      %38 = vector.extract %37[0, 0, 0] : f32 from vector<1x1x1xf32>
      %cst_17 = arith.constant 2.048000e+03 : f32
      %39 = arith.divf %38, %cst_17 : f32
      %40 = vector.broadcast %39 : f32 to vector<1x1xf32>
      %c0_18 = arith.constant 0 : index
      %c0_19 = arith.constant 0 : index
      %41 = vector.load %arg3[%c0_18, %c0_19] : memref<1x1xf32, #tpu.memory_space<vmem>>, vector<1x1xf32>
      tpu.vector_store %arg3[%c0_18, %c0_19], %40 {strides = array<i32>} : memref<1x1xf32, #tpu.memory_space<vmem>>, vector<1x1xf32>,
    } else {
    }
    return
  }
  func.func @transform_0(%arg0: i32) -> (i32, i32) {
    %c0_i32 = arith.constant 0 : i32
    %c0_i32_0 = arith.constant 0 : i32
    return %arg0, %c0_i32 : i32, i32
  }
  func.func @transform_1(%arg0: i32) -> (i32, i32) {
    %c0_i32 = arith.constant 0 : i32
    %c0_i32_0 = arith.constant 0 : i32
    return %arg0, %c0_i32 : i32, i32
  }
  func.func @transform_2(%arg0: i32) -> (i32, i32) {
    %c0_i32 = arith.constant 0 : i32
    %c0_i32_0 = arith.constant 0 : i32
    %c0_i32_1 = arith.constant 0 : i32
    return %c0_i32, %c0_i32_0 : i32, i32
  }
}

</mosaic_0001>

<llo_original>
// kernel: tpu_custom_call.1
$region0: #{tpu_custom_call.1}
  #allocation0 [shape = 'u32[]', space=smem, size = 0x4, offset = 0x4, fixed_abs, tag = 'smem constant byte address 0x4 - core index']
  #allocation1 [shape = 'u32[144,128]{1,0:T(1,128)}', space=vmem, size = 0x12000, scoped, tag = 'internal scratch']
  #allocation2 [shape = 'f32[16,128]{1,0:T(8,128)}', space=vmem, size = 0x2000, scoped, tag = 'scratch operand']
  %s0 = inlined_call_operand.hbm [shape: f32[16,128], index: 0, kind: input, shape index: {}]
  %s1 = inlined_call_operand.hbm [shape: f32[16,128], index: 1, kind: input, shape index: {}]
  %s2 = inlined_call_operand.hbm [shape: f32[1,1], index: 2, kind: output, shape index: {}]
  %s3 = sld [smem:[#allocation0]]
  $region34: #{tpu_custom_call.1} parent=0
    _
  %s5 = ssub.s32 1, %s3
  %s6 = scalar_select 0, %s5, %s3
  $region1: #{tpu_custom_call.1} parent=0
    #allocation3 [shape = 'u8[8192]{0}', space=vmem, size = 0x2000, scoped, tag = 'input window, operand 0, single buffered']
    #allocation4 [shape = 's32[1]{0}', space=sflag, size = 0x4, scoped, tag = 'scoped memory for tpu_custom_call.1']
    #allocation5 [shape = 's32[1]{0}', space=sflag, size = 0x4, scoped, tag = 'scoped memory for tpu_custom_call.1']
    #allocation6 [shape = 'u8[8192]{0}', space=vmem, size = 0x2000, scoped, tag = 'input window, operand 1, single buffered']
    #allocation7 [shape = 's32[1]{0}', space=sflag, size = 0x4, scoped, tag = 'scoped memory for tpu_custom_call.1']
    #allocation8 [shape = 'u8[512]{0}', space=vmem, size = 0x400, scoped, tag = 'output window, operand 0, single buffered']
    %7 = vsyncpa [#allocation4], 0
    %8 = vsyncpa [#allocation7], 0
    %9 = vsyncpa [#allocation5], 0
    // Predicated region
    $region2: #{tpu_custom_call.1} parent=1 // pred_check
      _
    $region3: #{tpu_custom_call.1} parent=1 // pred_check_branch
      %11 = sbr.rel (0) target = $region5
    $region4: #{tpu_custom_call.1} parent=1 // pred_region
      %s13 = ssub.s32 256, 256
      %14 = vsyncadd [#allocation4], %s13
      %s15 = sshll.u32 [#allocation3], 4
      %s16 = int_to_ptr.vmem [resolvable:$true] %s15
      %21 = dma.hbm_to_vmem [thread:$0]  %s0, 256, %s16, [#allocation4], 128, 128, 8
    $region5: #{tpu_custom_call.1} parent=1 // pred_fallthru
      _
    // Predicated region
    $region6: #{tpu_custom_call.1} parent=1 // pred_check
      _
    $region7: #{tpu_custom_call.1} parent=1 // pred_check_branch
      %23 = sbr.rel (0) target = $region9
    $region8: #{tpu_custom_call.1} parent=1 // pred_region
      %s25 = ssub.s32 256, 256
      %26 = vsyncadd [#allocation7], %s25
      %s27 = sshll.u32 [#allocation6], 4
      %s28 = int_to_ptr.vmem [resolvable:$true] %s27
      %33 = dma.hbm_to_vmem [thread:$0]  %s1, 256, %s28, [#allocation7], 128, 128, 8
    $region9: #{tpu_custom_call.1} parent=1 // pred_fallthru
      _
    // Predicated region
    $region10: #{tpu_custom_call.1} parent=1 // pred_check
      _
    $region11: #{tpu_custom_call.1} parent=1 // pred_check_branch
      %35 = sbr.rel (0) target = $region13
    $region12: #{tpu_custom_call.1} parent=1 // pred_region
      %36 = dma.done [#allocation4], 256
    $region13: #{tpu_custom_call.1} parent=1 // pred_fallthru
      _
    // Predicated region
    $region14: #{tpu_custom_call.1} parent=1 // pred_check
      _
    $region15: #{tpu_custom_call.1} parent=1 // pred_check_branch
      %38 = sbr.rel (0) target = $region17
    $region16: #{tpu_custom_call.1} parent=1 // pred_region
      %39 = dma.done [#allocation7], 256
    $region17: #{tpu_custom_call.1} parent=1 // pred_fallthru
      _
    %p40 = scmp.eq.s32.totalorder 0, 0
    // Predicated region
    $region18: #{tpu_custom_call.1} parent=1 // pred_check
      %p41 = pneg %p40
    $region19: #{tpu_custom_call.1} parent=1 // pred_check_branch
      %43 = sbr.rel (%p41) target = $region21
    $region20: #{tpu_custom_call.1} parent=1 // pred_region
      %44 = vst [vmem:[#allocation2] sm:$0xff] 0.0
      %45 = vst [vmem:[#allocation2 + $0x8] sm:$0xff] 0.0
    $region21: #{tpu_custom_call.1} parent=1 // pred_fallthru
      _
    %v46 = vld [vmem:[#allocation3] sm:$0xff]
    %v47 = vld [vmem:[#allocation3 + $0x8] sm:$0xff]
    %v48 = vld [vmem:[#allocation6] sm:$0xff]
    %v49 = vld [vmem:[#allocation6 + $0x8] sm:$0xff]
    %v50 = vsub.f32 %v46, %v48
    %v51 = vsub.f32 %v47, %v49
    %v52 = vand.u32 2147483647, %v50
    %v53 = vand.u32 2147483647, %v51
    %vm54 = vcmp.le.f32.partialorder %v52, 0.2
    %vm55 = vcmp.le.f32.partialorder %v53, 0.2
    %v56 = vmul.f32 %v52, %v52
    %v57 = vmul.f32 %v53, %v53
    %v58 = vadd.f32 %v56, 0.040000003
    %v59 = vadd.f32 %v57, 0.040000003
    %v60 = vmul.f32 %v58, 2.5
    %v61 = vmul.f32 %v59, 2.5
    %v62 = vsel %vm54, %v52, %v60
    %v63 = vsel %vm55, %v53, %v61
    %v64 = vlaneseq
    %v65 = vshrl.u32 %v64, 7
    %v66 = vadd.s32 %v65, 8
    %v67 = vlaneseq
    %v68 = vand.u32 %v67, 127
    %s69 = smul.u32 0, 16
    %v70 = vstv %s69
    %v71 = vadd.s32 %v70, %v65
    %v72 = vadd.s32 %v70, %v66
    %v73 = vmul.u32 %v71, 128
    %v74 = vmul.u32 %v72, 128
    %v75 = vadd.s32 %v73, %v68
    %v76 = vadd.s32 %v74, %v68
    %vm77 = vcmp.lt.s32.totalorder %v75, 2048
    %vm78 = vcmp.lt.s32.totalorder %v76, 2048
    %v79 = vsel %vm77, %v62, 0.0
    %v80 = vsel %vm78, %v63, 0.0
    %v81 = vld [vmem:[#allocation2] sm:$0xff]
    %v82 = vld [vmem:[#allocation2 + $0x8] sm:$0xff]
    %v83 = vadd.f32 %v81, %v79
    %v84 = vadd.f32 %v82, %v80
    %85 = vst [vmem:[#allocation2] sm:$0xff] %v83
    %86 = vst [vmem:[#allocation2 + $0x8] sm:$0xff] %v84
    // Predicated region
    $region22: #{tpu_custom_call.1} parent=1 // pred_check
      %p87 = pneg %p40
    $region23: #{tpu_custom_call.1} parent=1 // pred_check_branch
      %89 = sbr.rel (%p87) target = $region25
    $region24: #{tpu_custom_call.1} parent=1 // pred_region
      %v90 = vld [vmem:[#allocation2] sm:$0xff]
      %v91 = vld [vmem:[#allocation2 + $0x8] sm:$0xff]
      %v92 = vadd.f32 %v90, %v91
      %93 = vadd.xlane.f32.xlu0 %v92
      %v94 = vpop.xlane.xlu0 %93
      %v95 = vrot.slane %v94, 4
      %v96 = vadd.f32 %v94, %v95
      %v97 = vrot.slane %v96, 2
      %v98 = vadd.f32 %v96, %v97
      %v99 = vrot.slane %v98, 1
      %v100 = vadd.f32 %v98, %v99
      %s101 = vtos %v100
      %v102 = vrcp.pop 2048.0
      %s103 = vtos %v102
      %s104 = smul.f32 %s101, %s103
      %v105 = vstv %s104
      %vm106 = vcmask 0
      %107 = vst.msk [vmem:[#allocation8] sm:$0x1] %vm106, %v105
    $region25: #{tpu_custom_call.1} parent=1 // pred_fallthru
      _
    // Predicated region
    $region26: #{tpu_custom_call.1} parent=1 // pred_check
      _
    $region27: #{tpu_custom_call.1} parent=1 // pred_check_branch
      %109 = sbr.rel (0) target = $region29
    $region28: #{tpu_custom_call.1} parent=1 // pred_region
      %s111 = ssub.s32 16, 16
      %112 = vsyncadd [#allocation5], %s111
      %s114 = sshll.u32 [#allocation8], 4
      %s115 = int_to_ptr.vmem [resolvable:$true] %s114
      %117 = dma.vmem_to_hbm [thread:$0]  %s115, 16, %s2, [#allocation5]
    $region29: #{tpu_custom_call.1} parent=1 // pred_fallthru
      _
    // Predicated region
    $region30: #{tpu_custom_call.1} parent=1 // pred_check
      _
    $region31: #{tpu_custom_call.1} parent=1 // pred_check_branch
      %119 = sbr.rel (0) target = $region33
    $region32: #{tpu_custom_call.1} parent=1 // pred_region
      %120 = dma.done [#allocation5], 16
    $region33: #{tpu_custom_call.1} parent=1 // pred_fallthru
      _
    %121 = vsyncpa [#allocation4], 1
    %122 = vsyncpa [#allocation7], 1
    %123 = vsyncpa [#allocation5], 1

</llo_original>
